<compile_context>
chip_gen: v7x
topology: tpu7x:2x2x1
jax: 0.10.0
libtpu: 0.0.40
codegen_flags: <defaults>
</compile_context>

<pallas_src>
import functools

import jax
import jax.numpy as jnp
from jax import lax
from jax.experimental import pallas as pl
from jax.experimental.pallas import tpu as pltpu

LANE = 128
_VMEM_LIMIT = 32 * 1024 * 1024      # explicit scoped-VMEM limit (all gens; <= v7x 64 MiB physical)
_STREAM_BUDGET = 8 * 1024 * 1024    # double-buffered streaming bytes per pass
_TL_MAX = 4096                      # diminishing returns past a few K lanes


def _choose_tiling(L, K, C, itemsize):
    """Pick the lane tile TL: (TL, num_tiles, ragged).

    Preference order (never pads the big streams in HBM):
      1. single full-extent tile (legal for any L),
      2. largest 128-multiple divisor of L under the VMEM stream budget,
      3. large 128-multiple tiles with a ragged final tile handled in-kernel.
    """
    # Double-buffered streaming bytes per lane column, max over the two passes.
    per_col = max(2 * (K + C) * itemsize,                # pass 1: mask + feat in
                  2 * K * itemsize + 4 * C * itemsize)   # pass 2: mask in + 2C out
    tl_cap = max(LANE, min(_TL_MAX, (_STREAM_BUDGET // per_col) // LANE * LANE))

    if L <= tl_cap:
        return L, 1, False                               # one full-extent tile
    if L % LANE == 0:
        # Largest 128-multiple divisor of L that is <= tl_cap and >= 512
        # (tiles below ~512 lanes lose too much to per-grid-step overhead).
        for mult in range(tl_cap // LANE, 3, -1):
            cand = mult * LANE
            if L % cand == 0:
                return cand, L // cand, False
    # Ragged: big lane-aligned tiles, partial final tile masked in-kernel.
    num_tiles = -(-L // tl_cap)
    return tl_cap, num_tiles, (L % tl_cap != 0)


def _stats_kernel(mask_ref, feat_ref, fs_ref, ms_ref, mm_ref, *,
                  tiles_per_split, num_tiles, tl, valid_l, ragged, needs_skip):
    """Per-image pooled stats, accumulated over the L (spatial) grid axis.

    mask_ref: [1, K, TL], feat_ref: [1, C, TL]
    fs_ref:   [1, 1, C, K]   sum_l feat[c, l] * mask[k, l]   ([C, K] layout)
    ms_ref:   [1, 1, K, 1]   sum_l mask
    mm_ref:   [1, 1, K, 1]   max_l mask
    """
    s = pl.program_id(0)            # L-split index (megacore balance)
    l = pl.program_id(2)            # tile index within the split
    t = s * tiles_per_split + l     # global L-tile index

    @pl.when(l == 0)
    def _init():
        fs_ref[...] = jnp.zeros_like(fs_ref)
        ms_ref[...] = jnp.zeros_like(ms_ref)
        mm_ref[...] = jnp.full_like(mm_ref, -jnp.inf)

    def accumulate(mask, feat, mm_src):
        # Contract the lane axis of both operands; the [C, K] result keeps the
        # transposed operand the small K-row mask tile (cheap) and matches the
        # layout pass 2 consumes.
        fs = lax.dot_general(feat, mask, (((1,), (1,)), ((), ())),
                             preferred_element_type=jnp.float32)           # [C, K]
        ms = jnp.sum(mask.astype(jnp.float32), axis=-1, keepdims=True)     # [K, 1]
        mm = jnp.max(mm_src, axis=-1, keepdims=True).astype(jnp.float32)   # [K, 1]
        fs_ref[0, 0] = fs_ref[0, 0] + fs
        ms_ref[0, 0] = ms_ref[0, 0] + ms
        mm_ref[0, 0] = jnp.maximum(mm_ref[0, 0], mm)

    def full_tile():
        mask = mask_ref[0]
        accumulate(mask, feat_ref[0], mask)

    if ragged:
        # All but the final tile: no masking overhead at all.
        @pl.when(t < num_tiles - 1)
        def _():
            full_tile()

        # Final (partial) tile: zero invalid columns of BOTH operands (partial
        # input blocks read unspecified data; 0 * garbage can be NaN through
        # the MXU) and -inf-guard the running max.
        @pl.when(t == num_tiles - 1)
        def _():
            tail = valid_l - (num_tiles - 1) * tl
            valid = lax.broadcasted_iota(jnp.int32, (1, tl), 1) < tail
            mask = jnp.where(valid, mask_ref[0], 0).astype(mask_ref.dtype)
            feat = jnp.where(valid, feat_ref[0], 0).astype(feat_ref.dtype)
            mm_src = jnp.where(valid, mask.astype(jnp.float32), -jnp.inf)
            accumulate(mask, feat, mm_src)
    elif needs_skip:
        # Odd tile count split across two halves: the cloned tail step of the
        # second half is a no-op (its index_map is clamped to the previous
        # block, so the input DMA is elided too).
        @pl.when(t < num_tiles)
        def _():
            full_tile()
    else:
        full_tile()


def _project_kernel(fc_ref, mask_ref, out_ref):
    """out[b, :, tile] = fc[b] ([2C, K]) @ mask[b, :, tile] ([K, TL])."""
    out_ref[0] = jnp.dot(fc_ref[0], mask_ref[0],
                         preferred_element_type=jnp.float32).astype(out_ref.dtype)


def sync_category_center2_forward(feat, mask, weight, bias, running_center,
                                  momentum=0.1, eps=1e-5, training=True,
                                  out_dtype=None):
    """Forward of SyncCategoryCenter2 (single-device semantics).

    feat: [b, C, h, w]  (num_features = C)
    mask: [b, K, h, w]  (num_category = K)
    returns: (output [b, 2C, h, w], new_running_center [K, C])
    """
    b, C, h, w = feat.shape
    K = mask.shape[1]
    L = h * w
    cdt = feat.dtype                 # dtype of the big streams / MXU inputs
    # Pass 2 is HBM-write bound (arithmetic intensity ~K/2 flops per byte); if
    # the consumer tolerates it, pass out_dtype=jnp.bfloat16 to halve the
    # dominant [b, 2C, L] output stream.  Default follows the input dtype so
    # the fp32 reference check below stays tight.
    odt = cdt if out_dtype is None else out_dtype
    itemsize = jnp.dtype(cdt).itemsize

    TL, num_tiles, ragged = _choose_tiling(L, K, C, itemsize)

    # 2-way split of the L reduction for megacore balance (v7x has 2 TCs):
    # only worthwhile when the batch axis alone can't balance the cores.
    S = 2 if (b % 2 == 1 and num_tiles >= 2) else 1
    tps = -(-num_tiles // S)                     # tiles per split
    needs_skip = (S * tps != num_tiles)

    # Free reshapes only -- no jnp.pad of the big streams.
    mask_f = mask.reshape(b, K, L).astype(cdt)
    feat_f = feat.reshape(b, C, L)

    if not needs_skip:
        lane_map = lambda s, i, l: (i, 0, s * tps + l)
    else:
        # Clamp the cloned tail step of the second split onto the previous
        # block (same index => DMA elided); the kernel skips its accumulate.
        lane_map = lambda s, i, l: (i, 0, jnp.minimum(s * tps + l, num_tiles - 1))

    # --- Pass 1: per-image pooled stats -------------------------------------
    fs, ms, mm = pl.pallas_call(
        functools.partial(_stats_kernel, tiles_per_split=tps,
                          num_tiles=num_tiles, tl=TL, valid_l=L,
                          ragged=ragged, needs_skip=needs_skip),
        out_shape=(
            jax.ShapeDtypeStruct((b, S, C, K), jnp.float32),
            jax.ShapeDtypeStruct((b, S, K, 1), jnp.float32),
            jax.ShapeDtypeStruct((b, S, K, 1), jnp.float32),
        ),
        grid_spec=pltpu.PrefetchScalarGridSpec(
            num_scalar_prefetch=0,
            grid=(S, b, tps),
            in_specs=[
                pl.BlockSpec((1, K, TL), lane_map),
                pl.BlockSpec((1, C, TL), lane_map),
            ],
            out_specs=[
                pl.BlockSpec((1, 1, C, K), lambda s, i, l: (i, s, 0, 0)),
                pl.BlockSpec((1, 1, K, 1), lambda s, i, l: (i, s, 0, 0)),
                pl.BlockSpec((1, 1, K, 1), lambda s, i, l: (i, s, 0, 0)),
            ],
        ),
        compiler_params=pltpu.CompilerParams(
            dimension_semantics=("parallel", "parallel", "arbitrary"),
            vmem_limit_bytes=_VMEM_LIMIT),
    )(mask_f, feat_f)

    # --- Tiny [K,C]-sized math in plain JAX ----------------------------------
    fs = jnp.sum(fs, axis=1)                     # [b, C, K]  combine L-splits
    ms = jnp.sum(ms, axis=1)                     # [b, K, 1]
    mm = jnp.max(mm, axis=1)                     # [b, K, 1]

    ms_row = jnp.swapaxes(ms, 1, 2)              # [b, 1, K]
    center_img_ck = fs / (ms_row + eps)          # [b, C, K]  per-image center (transposed)

    if training:
        # Single-device semantics of sync_category_center: the batch-reduced
        # stats give the synced center; EMA update uses momentum * mask_max.
        # TODO(synk): cross-device master/worker-queue sync is not modeled; on
        #             one device the batch-reduced stats are already exact.
        fsum_ck = jnp.sum(fs, axis=0)            # [C, K]
        msum = jnp.sum(ms, axis=0)               # [K, 1]
        mmax = jnp.max(mm, axis=0)               # [K, 1]
        feat_center = (fsum_ck / (msum.T + eps)).T           # [K, C]
        mom = momentum * mmax
        new_running = running_center * (1.0 - mom) + mom * feat_center
    else:
        feat_center = running_center.astype(jnp.float32)
        new_running = running_center

    feat_center_aff = feat_center * weight + bias            # [K, C]

    # Fused projection matrix [b, 2C, K]: rows [0:C) -> per-image centers,
    # rows [C:2C) -> affine global/running center.  Already in [C, K] layout,
    # so the kernel body contains no transpose.
    fc_glob_ck = jnp.broadcast_to(feat_center_aff.T[None], (b, C, K))
    fc_comb = jnp.concatenate([center_img_ck, fc_glob_ck], axis=1).astype(cdt)

    # --- Pass 2: fused un-pool, lane-dense unpadded [b, 2C, L] output --------
    # (If a profile shows exposed DMA here, pipeline_mode=pl.Buffered(3) on the
    #  mask/out specs is the next knob; default depth 2 keeps VMEM low on v7x.)
    out = pl.pallas_call(
        _project_kernel,
        out_shape=jax.ShapeDtypeStruct((b, 2 * C, L), odt),
        grid_spec=pltpu.PrefetchScalarGridSpec(
            num_scalar_prefetch=0,
            grid=(b, num_tiles),
            in_specs=[
                pl.BlockSpec((1, 2 * C, K), lambda i, l: (i, 0, 0)),
                pl.BlockSpec((1, K, TL), lambda i, l: (i, 0, l)),
            ],
            out_specs=pl.BlockSpec((1, 2 * C, TL), lambda i, l: (i, 0, l)),
        ),
        compiler_params=pltpu.CompilerParams(
            dimension_semantics=("parallel", "parallel"),
            vmem_limit_bytes=_VMEM_LIMIT),
    )(fc_comb, mask_f)

    return out.reshape(b, 2 * C, h, w), new_running


def _reference(feat, mask, weight, bias, running_center, momentum, eps):
    """Pure-JAX transcription of the PyTorch forward (training, single device)."""
    b, C, h, w = feat.shape
    K = mask.shape[1]
    m = mask.reshape(b, K, -1).astype(jnp.float32)
    f = feat.reshape(b, C, -1).astype(jnp.float32).transpose(0, 2, 1)
    fs_img = jnp.einsum('bkl,blc->bkc', m, f)
    ms_img = jnp.sum(m, axis=-1, keepdims=True)
    c_img = fs_img / (ms_img + eps)
    o_img = jnp.einsum('bck,bkl->bcl', c_img.transpose(0, 2, 1), m).reshape(b, C, h, w)
    fsum = jnp.sum(fs_img, axis=0)
    msum = jnp.sum(ms_img, axis=0)
    mmax = jnp.max(jnp.max(m, axis=-1), axis=0).reshape(K, 1)
    fc = fsum / (msum + eps)
    mom = momentum * mmax
    new_running = running_center * (1.0 - mom) + mom * fc
    fc_aff = fc * weight + bias
    mflat = m.transpose(1, 0, 2).reshape(K, -1)
    o = (fc_aff.T @ mflat).reshape(C, b, h, w).transpose(1, 0, 2, 3)
    return jnp.concatenate([o_img, o], axis=1), new_running


if __name__ == "__main__":
    momentum, eps = 0.1, 1e-5

    def run_case(b, C, K, h, w, key):
        kf, km = jax.random.split(key)
        feat = jax.random.normal(kf, (b, C, h, w), dtype=jnp.float32)
        mask = jax.random.uniform(km, (b, K, h, w), dtype=jnp.float32)

        # Parameters / buffers exactly as the module's reset_parameters().
        weight = jnp.ones((K, C), dtype=jnp.float32)
        bias = jnp.zeros((K, C), dtype=jnp.float32)
        running_center = jnp.zeros((K, C), dtype=jnp.float32)

        # Training mode: check output AND the running-center EMA update.
        out, new_running = sync_category_center2_forward(
            feat, mask, weight, bias, running_center,
            momentum=momentum, eps=eps, training=True)
        out = jax.block_until_ready(out)
        new_running = jax.block_until_ready(new_running)

        ref_out, ref_running = _reference(feat, mask, weight, bias,
                                          running_center, momentum, eps)
        tag = f"(b={b}, C={C}, K={K}, h={h}, w={w})"
        assert out.shape == (b, 2 * C, h, w), (out.shape, tag)
        assert jnp.allclose(out, ref_out, atol=1e-4, rtol=1e-4), f"output mismatch {tag}"
        assert jnp.allclose(new_running, ref_running, atol=1e-5, rtol=1e-5), \
            f"running_center mismatch {tag}"

        # Eval mode: exercises the running-center projection path.
        out_eval, _ = sync_category_center2_forward(
            feat, mask, weight, bias, new_running,
            momentum=momentum, eps=eps, training=False)
        out_eval = jax.block_until_ready(out_eval)
        assert out_eval.shape == (b, 2 * C, h, w), tag

    k1, k2, k3 = jax.random.split(jax.random.PRNGKey(0), 3)
    # Canonical small case: single full-extent L tile (L = 256).
    run_case(b=2, C=8, K=4, h=16, w=16, key=k1)
    # Multi-tile L reduction via an exact 128-multiple divisor (no pad/slice).
    run_case(b=2, C=8, K=4, h=80, w=80, key=k2)
    # Odd batch -> 2-way L split of pass 1 (v7x megacore path), incl. the
    # clamped/skipped tail tile of the second split (3 tiles over 2 splits).
    run_case(b=1, C=8, K=4, h=96, w=100, key=k3)

    print("KERNEL_OK")
</pallas_src>

<mosaic_0001>
module attributes {stable_mosaic.version = 11 : i64} {
  func.func @_stats_kernel(%arg0: i32, %arg1: i32, %arg2: i32, %arg3: memref<1x4x256xf32, #tpu.memory_space<vmem>>, %arg4: memref<1x8x256xf32, #tpu.memory_space<vmem>>, %arg5: memref<1x1x8x4xf32, #tpu.memory_space<vmem>>, %arg6: memref<1x1x4x1xf32, #tpu.memory_space<vmem>>, %arg7: memref<1x1x4x1xf32, #tpu.memory_space<vmem>>) attributes {dimension_semantics = [#tpu.dimension_semantics<parallel>, #tpu.dimension_semantics<parallel>, #tpu.dimension_semantics<arbitrary>], iteration_bounds = array<i64: 1, 2, 1>, scalar_prefetch = 0 : i64, scratch_operands = 0 : i64, tpu.core_type = #tpu.core_type<tc>, window_params = [{transform_indices = @transform_0, window_bounds = array<i64: 1, 4, 256>}, {transform_indices = @transform_1, window_bounds = array<i64: 1, 8, 256>}, {transform_indices = @transform_2, window_bounds = array<i64: 1, 1, 8, 4>}, {transform_indices = @transform_3, window_bounds = array<i64: 1, 1, 4, 1>}, {transform_indices = @transform_4, window_bounds = array<i64: 1, 1, 4, 1>}]} {
    %c0_i32 = arith.constant 0 : i32
    %0 = arith.cmpi eq, %arg2, %c0_i32 : i32
    %1 = arith.extui %0 : i1 to i32
    %c0_i32_0 = arith.constant 0 : i32
    %2 = arith.cmpi ne, %1, %c0_i32_0 : i32
    scf.if %2 {
      %cst_32 = arith.constant 0.000000e+00 : f32
      %30 = vector.broadcast %cst_32 : f32 to vector<1x1x8x4xf32>
      %c0_33 = arith.constant 0 : index
      %c0_34 = arith.constant 0 : index
      %c0_35 = arith.constant 0 : index
      %c0_36 = arith.constant 0 : index
      %31 = vector.load %arg5[%c0_33, %c0_34, %c0_35, %c0_36] : memref<1x1x8x4xf32, #tpu.memory_space<vmem>>, vector<1x1x8x4xf32>
      tpu.vector_store %arg5[%c0_33, %c0_34, %c0_35, %c0_36], %30 {strides = array<i32>} : memref<1x1x8x4xf32, #tpu.memory_space<vmem>>, vector<1x1x8x4xf32>,
      %cst_37 = arith.constant 0.000000e+00 : f32
      %32 = vector.broadcast %cst_37 : f32 to vector<1x1x4x1xf32>
      %c0_38 = arith.constant 0 : index
      %c0_39 = arith.constant 0 : index
      %c0_40 = arith.constant 0 : index
      %c0_41 = arith.constant 0 : index
      %33 = vector.load %arg6[%c0_38, %c0_39, %c0_40, %c0_41] : memref<1x1x4x1xf32, #tpu.memory_space<vmem>>, vector<1x1x4x1xf32>
      tpu.vector_store %arg6[%c0_38, %c0_39, %c0_40, %c0_41], %32 {strides = array<i32>} : memref<1x1x4x1xf32, #tpu.memory_space<vmem>>, vector<1x1x4x1xf32>,
      %cst_42 = arith.constant 0xFF800000 : f32
      %34 = vector.broadcast %cst_42 : f32 to vector<1x1x4x1xf32>
      %c0_43 = arith.constant 0 : index
      %c0_44 = arith.constant 0 : index
      %c0_45 = arith.constant 0 : index
      %c0_46 = arith.constant 0 : index
      %35 = vector.load %arg7[%c0_43, %c0_44, %c0_45, %c0_46] : memref<1x1x4x1xf32, #tpu.memory_space<vmem>>, vector<1x1x4x1xf32>
      tpu.vector_store %arg7[%c0_43, %c0_44, %c0_45, %c0_46], %34 {strides = array<i32>} : memref<1x1x4x1xf32, #tpu.memory_space<vmem>>, vector<1x1x4x1xf32>,
    } else {
    }
    %c0 = arith.constant 0 : index
    %c0_1 = arith.constant 0 : index
    %c0_2 = arith.constant 0 : index
    %3 = vector.load %arg3[%c0, %c0_1, %c0_2] : memref<1x4x256xf32, #tpu.memory_space<vmem>>, vector<1x4x256xf32>
    %4 = vector.shape_cast %3 : vector<1x4x256xf32> to vector<4x256xf32>
    %c0_3 = arith.constant 0 : index
    %c0_4 = arith.constant 0 : index
    %c0_5 = arith.constant 0 : index
    %5 = vector.load %arg4[%c0_3, %c0_4, %c0_5] : memref<1x8x256xf32, #tpu.memory_space<vmem>>, vector<1x8x256xf32>
    %6 = vector.shape_cast %5 : vector<1x8x256xf32> to vector<8x256xf32>
    %cst = arith.constant dense<0.000000e+00> : vector<8x4xf32>
    %7 = tpu.matmul %6, %4, %cst {dimension_numbers = #tpu.dot_dimension_numbers<[1], [1], [0], [0], [0, 0, 1, 0], [], []>} : vector<8x256xf32>, vector<4x256xf32>, vector<8x4xf32> -> vector<8x4xf32>
    %cst_6 = arith.constant dense<0.000000e+00> : vector<4xf32>
    %8 = vector.multi_reduction <add>, %4, %cst_6 [1] : vector<4x256xf32> to vector<4xf32>
    %9 = vector.shape_cast %8 : vector<4xf32> to vector<4x1xf32>
    %cst_7 = arith.constant dense<0xFF800000> : vector<4xf32>
    %10 = vector.multi_reduction <maximumf>, %4, %cst_7 [1] : vector<4x256xf32> to vector<4xf32>
    %11 = vector.shape_cast %10 : vector<4xf32> to vector<4x1xf32>
    %c0_8 = arith.constant 0 : index
    %c0_9 = arith.constant 0 : index
    %c0_10 = arith.constant 0 : index
    %c0_11 = arith.constant 0 : index
    %12 = vector.load %arg5[%c0_8, %c0_9, %c0_10, %c0_11] : memref<1x1x8x4xf32, #tpu.memory_space<vmem>>, vector<1x1x8x4xf32>
    %13 = vector.shape_cast %12 : vector<1x1x8x4xf32> to vector<8x4xf32>
    %14 = arith.addf %13, %7 : vector<8x4xf32>
    %c0_12 = arith.constant 0 : index
    %c0_13 = arith.constant 0 : index
    %c0_14 = arith.constant 0 : index
    %c0_15 = arith.constant 0 : index
    %15 = vector.load %arg5[%c0_12, %c0_13, %c0_14, %c0_15] : memref<1x1x8x4xf32, #tpu.memory_space<vmem>>, vector<1x1x8x4xf32>
    %16 = vector.shape_cast %15 : vector<1x1x8x4xf32> to vector<8x4xf32>
    %17 = vector.shape_cast %14 : vector<8x4xf32> to vector<1x1x8x4xf32>
    tpu.vector_store %arg5[%c0_12, %c0_13, %c0_14, %c0_15], %17 {strides = array<i32>} : memref<1x1x8x4xf32, #tpu.memory_space<vmem>>, vector<1x1x8x4xf32>,
    %c0_16 = arith.constant 0 : index
    %c0_17 = arith.constant 0 : index
    %c0_18 = arith.constant 0 : index
    %c0_19 = arith.constant 0 : index
    %18 = vector.load %arg6[%c0_16, %c0_17, %c0_18, %c0_19] : memref<1x1x4x1xf32, #tpu.memory_space<vmem>>, vector<1x1x4x1xf32>
    %19 = vector.shape_cast %18 : vector<1x1x4x1xf32> to vector<4x1xf32>
    %20 = arith.addf %19, %9 : vector<4x1xf32>
    %c0_20 = arith.constant 0 : index
    %c0_21 = arith.constant 0 : index
    %c0_22 = arith.constant 0 : index
    %c0_23 = arith.constant 0 : index
    %21 = vector.load %arg6[%c0_20, %c0_21, %c0_22, %c0_23] : memref<1x1x4x1xf32, #tpu.memory_space<vmem>>, vector<1x1x4x1xf32>
    %22 = vector.shape_cast %21 : vector<1x1x4x1xf32> to vector<4x1xf32>
    %23 = vector.shape_cast %20 : vector<4x1xf32> to vector<1x1x4x1xf32>
    tpu.vector_store %arg6[%c0_20, %c0_21, %c0_22, %c0_23], %23 {strides = array<i32>} : memref<1x1x4x1xf32, #tpu.memory_space<vmem>>, vector<1x1x4x1xf32>,
    %c0_24 = arith.constant 0 : index
    %c0_25 = arith.constant 0 : index
    %c0_26 = arith.constant 0 : index
    %c0_27 = arith.constant 0 : index
    %24 = vector.load %arg7[%c0_24, %c0_25, %c0_26, %c0_27] : memref<1x1x4x1xf32, #tpu.memory_space<vmem>>, vector<1x1x4x1xf32>
    %25 = vector.shape_cast %24 : vector<1x1x4x1xf32> to vector<4x1xf32>
    %26 = arith.maximumf %25, %11 : vector<4x1xf32>
    %c0_28 = arith.constant 0 : index
    %c0_29 = arith.constant 0 : index
    %c0_30 = arith.constant 0 : index
    %c0_31 = arith.constant 0 : index
    %27 = vector.load %arg7[%c0_28, %c0_29, %c0_30, %c0_31] : memref<1x1x4x1xf32, #tpu.memory_space<vmem>>, vector<1x1x4x1xf32>
    %28 = vector.shape_cast %27 : vector<1x1x4x1xf32> to vector<4x1xf32>
    %29 = vector.shape_cast %26 : vector<4x1xf32> to vector<1x1x4x1xf32>
    tpu.vector_store %arg7[%c0_28, %c0_29, %c0_30, %c0_31], %29 {strides = array<i32>} : memref<1x1x4x1xf32, #tpu.memory_space<vmem>>, vector<1x1x4x1xf32>,
    return
  }
  func.func @transform_0(%arg0: i32, %arg1: i32, %arg2: i32) -> (i32, i32, i32) {
    %c1_i32 = arith.constant 1 : i32
    %0 = arith.muli %arg0, %c1_i32 : i32
    %1 = arith.addi %0, %arg2 : i32
    %c0_i32 = arith.constant 0 : i32
    %c0_i32_0 = arith.constant 0 : i32
    return %arg1, %c0_i32, %1 : i32, i32, i32
  }
  func.func @transform_1(%arg0: i32, %arg1: i32, %arg2: i32) -> (i32, i32, i32) {
    %c1_i32 = arith.constant 1 : i32
    %0 = arith.muli %arg0, %c1_i32 : i32
    %1 = arith.addi %0, %arg2 : i32
    %c0_i32 = arith.constant 0 : i32
    %c0_i32_0 = arith.constant 0 : i32
    return %arg1, %c0_i32, %1 : i32, i32, i32
  }
  func.func @transform_2(%arg0: i32, %arg1: i32, %arg2: i32) -> (i32, i32, i32, i32) {
    %c0_i32 = arith.constant 0 : i32
    %c0_i32_0 = arith.constant 0 : i32
    %c0_i32_1 = arith.constant 0 : i32
    return %arg1, %arg0, %c0_i32, %c0_i32_0 : i32, i32, i32, i32
  }
  func.func @transform_3(%arg0: i32, %arg1: i32, %arg2: i32) -> (i32, i32, i32, i32) {
    %c0_i32 = arith.constant 0 : i32
    %c0_i32_0 = arith.constant 0 : i32
    %c0_i32_1 = arith.constant 0 : i32
    return %arg1, %arg0, %c0_i32, %c0_i32_0 : i32, i32, i32, i32
  }
  func.func @transform_4(%arg0: i32, %arg1: i32, %arg2: i32) -> (i32, i32, i32, i32) {
    %c0_i32 = arith.constant 0 : i32
    %c0_i32_0 = arith.constant 0 : i32
    %c0_i32_1 = arith.constant 0 : i32
    return %arg1, %arg0, %c0_i32, %c0_i32_0 : i32, i32, i32, i32
  }
}

</mosaic_0001>

<llo_original>
// kernel: tpu_custom_call.1
$region0: #{tpu_custom_call.1}
  #allocation0 [shape = 'u32[]', space=smem, size = 0x4, offset = 0x4, fixed_abs, tag = 'smem constant byte address 0x4 - core index']
  #allocation1 [shape = 'u32[144,128]{1,0:T(1,128)}', space=vmem, size = 0x12000, scoped, tag = 'internal scratch']
  %s0 = inlined_call_operand.hbm [shape: f32[2,4,256], index: 0, kind: input, shape index: {}]
  %s1 = inlined_call_operand.hbm [shape: f32[2,8,256], index: 1, kind: input, shape index: {}]
  %s2 = inlined_call_operand.vmem [shape: f32[2,1,8,4], index: 2, kind: output, shape index: {0}]
  %s3 = inlined_call_operand.vmem [shape: f32[2,1,4,1], index: 3, kind: output, shape index: {1}]
  %s4 = inlined_call_operand.vmem [shape: f32[2,1,4,1], index: 4, kind: output, shape index: {2}]
  %5 = xla_tuple %s2, %s3, %s4
  %s6 = sld [smem:[#allocation0]]
  $region69: #{tpu_custom_call.1} parent=0
    _
  %s8 = ssub.s32 1, %s6
  %s9 = scalar_select 0, %s8, %s6
  $region1: #{tpu_custom_call.1} parent=0
    #allocation2 [shape = 'u8[8192]{0}', space=vmem, size = 0x2000, scoped, tag = 'input window, operand 0']
    #allocation3 [shape = 's32[2]{0}', space=sflag, size = 0x8, scoped, tag = 'scoped memory for tpu_custom_call.1']
    #allocation4 [shape = 'u8[16384]{0}', space=vmem, size = 0x4000, scoped, tag = 'input window, operand 1']
    #allocation5 [shape = 's32[2]{0}', space=sflag, size = 0x8, scoped, tag = 'scoped memory for tpu_custom_call.1']
    %10 = vsyncpa [#allocation3], 0
    %s11 = scalar_lea.sflag [#allocation3], 1
    %12 = vsyncpa %s11, 0
    %13 = vsyncpa [#allocation5], 0
    %s14 = scalar_lea.sflag [#allocation5], 1
    %15 = vsyncpa %s14, 0
    loop: start=0, step=1, limit=4
    $region2: #{tpu_custom_call.1} parent=1 // loop_pre_header
      _
    $region3: #{tpu_custom_call.1} parent=1 // loop_header
      %s17 = sphi 0, %s21
      %p18 = scmp.ge.s32.totalorder %s17, 4
      %s24 = sphi 0, %s43
      %s25 = sphi 0, %s39
      %s26 = sphi 0, %s35
      %s27 = sphi 0, %s24
      %s28 = sphi 0, %s25
      %s29 = sphi 0, %s26
      %s30 = sphi 0, %s27
      %s31 = sphi 0, %s28
      %s32 = sphi 0, %s29
      %s50 = sphi 0, %s52
      %s53 = sphi 0, %s50
      %s54 = sphi 0, %s53
      %s70 = sphi 0, %s54
      %s80 = sphi 0, %s82
      %s83 = sphi 0, %s80
      %s84 = sphi 0, %s83
      %s100 = sphi 0, %s84
      %s108 = sphi 0, %s110
      %s111 = sphi 0, %s108
      %s112 = sphi 0, %s111
      %s128 = sphi 0, %s112
      %s136 = sphi 0, %s138
      %s139 = sphi 0, %s136
      %s140 = sphi 0, %s139
      %s156 = sphi 0, %s140
      %s164 = sphi 0, %s166
      %s167 = sphi 0, %s164
      %s168 = sphi 0, %s167
      %s184 = sphi 0, %s168
    $region4: #{tpu_custom_call.1} parent=1 // loop_header_branch
      %20 = sbr.rel (%p18) target = $region8
    $region5: #{tpu_custom_call.1} parent=1 // loop_body
      %s22 = ssub.s32 %s17, 1
      %s23 = ssub.s32 %s17, 2
      %s33 = sadd.s32 1, %s26
      %p34 = scmp.ge.s32.totalorder %s33, 1
      %s35 = scalar_select %p34, 0, %s33
      %s36 = sadd.s32 1, %s25
      %s37 = scalar_select %p34, %s36, %s25
      %p38 = scmp.ge.s32.totalorder %s37, 2
      %s39 = scalar_select %p38, 0, %s37
      %s40 = sadd.s32 1, %s24
      %s41 = scalar_select %p38, %s40, %s24
      %p42 = scmp.ge.s32.totalorder %s41, 1
      %s43 = scalar_select %p42, 0, %s41
      %s44 = sadd.s32 %s24, %s26
      %s45 = sadd.s32 %s43, %s35
      %s46 = ssub.s32 %s25, %s39
      %s47 = ssub.s32 %s44, %s45
      %s48 = sor.u32 %s46, %s47
      %p49 = scmp.eq.s32.totalorder %s48, 0
      %s51 = sadd.s32 %s50, 1
      %s52 = scalar_select %p49, %s50, %s51
      %p55 = pneg %p49
      %p56 = scmp.eq.s32.totalorder %s17, 1
      %p57 = por %p55, %p56
      %p58 = scmp.ne.s32.totalorder %s50, %s53
      %p59 = scmp.eq.s32.totalorder %s17, 0
      %p60 = por %p58, %p59
      %p61 = scmp.ne.s32.totalorder %s50, %s53
      %p62 = scmp.eq.s32.totalorder %s22, 1
      %p63 = por %p61, %p62
      %p64 = scmp.ne.s32.totalorder %s53, %s54
      %p65 = scmp.eq.s32.totalorder %s22, 0
      %p66 = por %p64, %p65
      %p67 = scmp.ne.s32.totalorder %s53, %s54
      %p68 = scmp.eq.s32.totalorder %s23, 1
      %p69 = por %p67, %p68
      %p71 = scmp.ne.s32.totalorder %s54, %s70
      %p72 = scmp.eq.s32.totalorder %s23, 0
      %p73 = por %p71, %p72
      %s74 = sadd.s32 %s24, %s26
      %s75 = sadd.s32 %s43, %s35
      %s76 = ssub.s32 %s25, %s39
      %s77 = ssub.s32 %s74, %s75
      %s78 = sor.u32 %s76, %s77
      %p79 = scmp.eq.s32.totalorder %s78, 0
      %s81 = sadd.s32 %s80, 1
      %s82 = scalar_select %p79, %s80, %s81
      %p85 = pneg %p79
      %p86 = scmp.eq.s32.totalorder %s17, 1
      %p87 = por %p85, %p86
      %p88 = scmp.ne.s32.totalorder %s80, %s83
      %p89 = scmp.eq.s32.totalorder %s17, 0
      %p90 = por %p88, %p89
      %p91 = scmp.ne.s32.totalorder %s80, %s83
      %p92 = scmp.eq.s32.totalorder %s22, 1
      %p93 = por %p91, %p92
      %p94 = scmp.ne.s32.totalorder %s83, %s84
      %p95 = scmp.eq.s32.totalorder %s22, 0
      %p96 = por %p94, %p95
      %p97 = scmp.ne.s32.totalorder %s83, %s84
      %p98 = scmp.eq.s32.totalorder %s23, 1
      %p99 = por %p97, %p98
      %p101 = scmp.ne.s32.totalorder %s84, %s100
      %p102 = scmp.eq.s32.totalorder %s23, 0
      %p103 = por %p101, %p102
      %s104 = ssub.s32 %s25, %s39
      %s105 = ssub.s32 %s24, %s43
      %s106 = sor.u32 %s104, %s105
      %p107 = scmp.eq.s32.totalorder %s106, 0
      %s109 = sadd.s32 %s108, 1
      %s110 = scalar_select %p107, %s108, %s109
      %p113 = pneg %p107
      %p114 = scmp.eq.s32.totalorder %s17, 1
      %p115 = por %p113, %p114
      %p116 = scmp.ne.s32.totalorder %s108, %s111
      %p117 = scmp.eq.s32.totalorder %s17, 0
      %p118 = por %p116, %p117
      %p119 = scmp.ne.s32.totalorder %s108, %s111
      %p120 = scmp.eq.s32.totalorder %s22, 1
      %p121 = por %p119, %p120
      %p122 = scmp.ne.s32.totalorder %s111, %s112
      %p123 = scmp.eq.s32.totalorder %s22, 0
      %p124 = por %p122, %p123
      %p125 = scmp.ne.s32.totalorder %s111, %s112
      %p126 = scmp.eq.s32.totalorder %s23, 1
      %p127 = por %p125, %p126
      %p129 = scmp.ne.s32.totalorder %s112, %s128
      %p130 = scmp.eq.s32.totalorder %s23, 0
      %p131 = por %p129, %p130
      %s132 = ssub.s32 %s25, %s39
      %s133 = ssub.s32 %s24, %s43
      %s134 = sor.u32 %s132, %s133
      %p135 = scmp.eq.s32.totalorder %s134, 0
      %s137 = sadd.s32 %s136, 1
      %s138 = scalar_select %p135, %s136, %s137
      %p141 = pneg %p135
      %p142 = scmp.eq.s32.totalorder %s17, 1
      %p143 = por %p141, %p142
      %p144 = scmp.ne.s32.totalorder %s136, %s139
      %p145 = scmp.eq.s32.totalorder %s17, 0
      %p146 = por %p144, %p145
      %p147 = scmp.ne.s32.totalorder %s136, %s139
      %p148 = scmp.eq.s32.totalorder %s22, 1
      %p149 = por %p147, %p148
      %p150 = scmp.ne.s32.totalorder %s139, %s140
      %p151 = scmp.eq.s32.totalorder %s22, 0
      %p152 = por %p150, %p151
      %p153 = scmp.ne.s32.totalorder %s139, %s140
      %p154 = scmp.eq.s32.totalorder %s23, 1
      %p155 = por %p153, %p154
      %p157 = scmp.ne.s32.totalorder %s140, %s156
      %p158 = scmp.eq.s32.totalorder %s23, 0
      %p159 = por %p157, %p158
      %s160 = ssub.s32 %s25, %s39
      %s161 = ssub.s32 %s24, %s43
      %s162 = sor.u32 %s160, %s161
      %p163 = scmp.eq.s32.totalorder %s162, 0
      %s165 = sadd.s32 %s164, 1
      %s166 = scalar_select %p163, %s164, %s165
      %p169 = pneg %p163
      %p170 = scmp.eq.s32.totalorder %s17, 1
      %p171 = por %p169, %p170
      %p172 = scmp.ne.s32.totalorder %s164, %s167
      %p173 = scmp.eq.s32.totalorder %s17, 0
      %p174 = por %p172, %p173
      %p175 = scmp.ne.s32.totalorder %s164, %s167
      %p176 = scmp.eq.s32.totalorder %s22, 1
      %p177 = por %p175, %p176
      %p178 = scmp.ne.s32.totalorder %s167, %s168
      %p179 = scmp.eq.s32.totalorder %s22, 0
      %p180 = por %p178, %p179
      %p181 = scmp.ne.s32.totalorder %s167, %s168
      %p182 = scmp.eq.s32.totalorder %s23, 1
      %p183 = por %p181, %p182
      %p185 = scmp.ne.s32.totalorder %s168, %s184
      %p186 = scmp.eq.s32.totalorder %s23, 0
      %p187 = por %p185, %p186
      %p188 = scmp.le.s32.totalorder 1, %s17
      %p189 = scmp.lt.s32.totalorder %s17, 3
      %p190 = pnand %p188, %p189
      %p191 = pneg %p190
      // Predicated region
      $region9: #{tpu_custom_call.1} parent=5 // pred_check
        _
      $region10: #{tpu_custom_call.1} parent=5 // pred_check_branch
        %193 = sbr.rel (%p190) target = $region12
      $region11: #{tpu_custom_call.1} parent=5 // pred_region
        %s194 = ssub.s32 %s17, 1
      $region12: #{tpu_custom_call.1} parent=5 // pred_fallthru
        _
      %p195 = scmp.lt.s32.totalorder %s17, 2
      // Predicated region
      $region13: #{tpu_custom_call.1} parent=5 // pred_check
        %p196 = pneg %p195
      $region14: #{tpu_custom_call.1} parent=5 // pred_check_branch
        %198 = sbr.rel (%p196) target = $region16
      $region15: #{tpu_custom_call.1} parent=5 // pred_region
        // Predicated region
        $region17: #{tpu_custom_call.1} parent=15 // pred_check
          %p199 = pneg %p60
        $region18: #{tpu_custom_call.1} parent=15 // pred_check_branch
          %201 = sbr.rel (%p199) target = $region20
        $region19: #{tpu_custom_call.1} parent=15 // pred_region
          %s202 = sand.u32 %s50, 1
          %s203 = scalar_lea.sflag [#allocation3], %s202
          %s204 = sand.u32 %s50, 1
          %s205 = smul.addr %s204, 8
          %s206 = scalar_lea.vmem [#allocation2], %s205
          %s207 = sadd.s32 %s24, %s26
          %s208 = smul.u32 2, %s207
          %s210 = ssub.s32 128, 128
          %211 = vsyncadd %s203, %s210
          %s212 = smul.addr %s25, 2
          %s213 = sadd.s32 %s208, %s212
          %s214 = smul.addr %s213, 64
          %s215 = scalar_lea.hbm %s0, %s214
          %s217 = sshll.u32 %s206, 4
          %s218 = int_to_ptr.vmem [resolvable:$true] %s217
          %220 = dma.hbm_to_vmem [thread:$0]  %s215, 128, %s218, %s203
        $region20: #{tpu_custom_call.1} parent=15 // pred_fallthru
          _
        // Predicated region
        $region21: #{tpu_custom_call.1} parent=15 // pred_check
          %p221 = pneg %p90
        $region22: #{tpu_custom_call.1} parent=15 // pred_check_branch
          %223 = sbr.rel (%p221) target = $region24
        $region23: #{tpu_custom_call.1} parent=15 // pred_region
          %s224 = sand.u32 %s80, 1
          %s225 = scalar_lea.sflag [#allocation5], %s224
          %s226 = sand.u32 %s80, 1
          %s227 = smul.addr %s226, 16
          %s228 = scalar_lea.vmem [#allocation4], %s227
          %s229 = sadd.s32 %s24, %s26
          %s230 = smul.u32 2, %s229
          %s232 = ssub.s32 256, 256
          %233 = vsyncadd %s225, %s232
          %s234 = smul.addr %s25, 2
          %s235 = sadd.s32 %s230, %s234
          %s236 = smul.addr %s235, 128
          %s237 = scalar_lea.hbm %s1, %s236
          %s239 = sshll.u32 %s228, 4
          %s240 = int_to_ptr.vmem [resolvable:$true] %s239
          %242 = dma.hbm_to_vmem [thread:$0]  %s237, 256, %s240, %s225
        $region24: #{tpu_custom_call.1} parent=15 // pred_fallthru
          _
      $region16: #{tpu_custom_call.1} parent=5 // pred_fallthru
        _
      %p243 = scmp.le.s32.totalorder 1, %s17
      %p244 = scmp.lt.s32.totalorder %s17, 3
      %p245 = pnand %p243, %p244
      %p246 = pneg %p245
      // Predicated region
      $region25: #{tpu_custom_call.1} parent=5 // pred_check
        _
      $region26: #{tpu_custom_call.1} parent=5 // pred_check_branch
        %248 = sbr.rel (%p245) target = $region28
      $region27: #{tpu_custom_call.1} parent=5 // pred_region
        %s249 = ssub.s32 %s17, 1
        %s250 = sand.u32 %s53, 1
        %s251 = scalar_lea.sflag [#allocation3], %s250
        %s252 = sand.u32 %s53, 1
        %s253 = smul.addr %s252, 8
        %s254 = scalar_lea.vmem [#allocation2], %s253
        // Predicated region
        $region29: #{tpu_custom_call.1} parent=27 // pred_check
          %p255 = pneg %p66
        $region30: #{tpu_custom_call.1} parent=27 // pred_check_branch
          %257 = sbr.rel (%p255) target = $region32
        $region31: #{tpu_custom_call.1} parent=27 // pred_region
          %258 = dma.done %s251, 128
        $region32: #{tpu_custom_call.1} parent=27 // pred_fallthru
          _
        %s259 = sand.u32 %s83, 1
        %s260 = scalar_lea.sflag [#allocation5], %s259
        %s261 = sand.u32 %s83, 1
        %s262 = smul.addr %s261, 16
        %s263 = scalar_lea.vmem [#allocation4], %s262
        // Predicated region
        $region33: #{tpu_custom_call.1} parent=27 // pred_check
          %p264 = pneg %p96
        $region34: #{tpu_custom_call.1} parent=27 // pred_check_branch
          %266 = sbr.rel (%p264) target = $region36
        $region35: #{tpu_custom_call.1} parent=27 // pred_region
          %267 = dma.done %s260, 256
        $region36: #{tpu_custom_call.1} parent=27 // pred_fallthru
          _
        %s268 = sand.u32 %s53, 1
        %s269 = scalar_lea.sflag [#allocation3], %s268
        %s270 = sand.u32 %s53, 1
        %s271 = smul.addr %s270, 8
        %s272 = scalar_lea.vmem [#allocation2], %s271
        %p273 = pneg %p66
        %p274 = pneg %p63
        %s275 = sand.u32 %s83, 1
        %s276 = scalar_lea.sflag [#allocation5], %s275
        %s277 = sand.u32 %s83, 1
        %s278 = smul.addr %s277, 16
        %s279 = scalar_lea.vmem [#allocation4], %s278
        %p280 = pneg %p96
        %p281 = pneg %p93
        %p282 = pneg %p124
        %p283 = pneg %p121
        %p284 = scmp.lt.s32.totalorder %s28, 1
        %s285 = scalar_select %p284, %s28, 1
        %p286 = scmp.lt.s32.totalorder %s27, 0
        %s287 = scalar_select %p286, %s27, 0
        %s288 = sadd.s32 %s287, %s285
        %s289 = smul.addr %s288, 8
        %s290 = scalar_lea.vmem %s2, %s289
        %p291 = pneg %p152
        %p292 = pneg %p149
        %p293 = scmp.lt.s32.totalorder %s28, 1
        %s294 = scalar_select %p293, %s28, 1
        %p295 = scmp.lt.s32.totalorder %s27, 0
        %s296 = scalar_select %p295, %s27, 0
        %s297 = sadd.s32 %s296, %s294
        %s298 = smul.addr %s297, 4
        %s299 = scalar_lea.vmem %s3, %s298
        %p300 = pneg %p180
        %p301 = pneg %p177
        %p302 = scmp.lt.s32.totalorder %s28, 1
        %s303 = scalar_select %p302, %s28, 1
        %p304 = scmp.lt.s32.totalorder %s27, 0
        %s305 = scalar_select %p304, %s27, 0
        %s306 = sadd.s32 %s305, %s303
        %s307 = smul.addr %s306, 4
        %s308 = scalar_lea.vmem %s4, %s307
        %s309 = sadd.s32 %s27, %s29
        %s310 = smul.u32 2, %s309
        %s311 = sadd.s32 %s27, %s29
        %s312 = smul.u32 2, %s311
        %p313 = scmp.lt.s32.totalorder %s28, 1
        %s314 = scalar_select %p313, %s28, 1
        %p315 = scmp.lt.s32.totalorder %s27, 0
        %s316 = scalar_select %p315, %s27, 0
        %s317 = sadd.s32 %s316, %s314
        %s318 = smul.addr %s317, 8
        %s319 = scalar_lea.vmem %s2, %s318
        %p320 = scmp.lt.s32.totalorder %s28, 1
        %s321 = scalar_select %p320, %s28, 1
        %p322 = scmp.lt.s32.totalorder %s27, 0
        %s323 = scalar_select %p322, %s27, 0
        %s324 = sadd.s32 %s323, %s321
        %s325 = smul.addr %s324, 4
        %s326 = scalar_lea.vmem %s3, %s325
        %p327 = scmp.lt.s32.totalorder %s28, 1
        %s328 = scalar_select %p327, %s28, 1
        %p329 = scmp.lt.s32.totalorder %s27, 0
        %s330 = scalar_select %p329, %s27, 0
        %s331 = sadd.s32 %s330, %s328
        %s332 = smul.addr %s331, 4
        %s333 = scalar_lea.vmem %s4, %s332
        %p334 = scmp.eq.s32.totalorder %s29, 0
        // Predicated region
        $region37: #{tpu_custom_call.1} parent=27 // pred_check
          %p335 = pneg %p334
        $region38: #{tpu_custom_call.1} parent=27 // pred_check_branch
          %337 = sbr.rel (%p335) target = $region40
        $region39: #{tpu_custom_call.1} parent=27 // pred_region
          %vm338 = vcmask 31744
          %339 = vst.msk [vmem:[%s319] sm:$0xff] %vm338, 0.0
          %vm340 = vcmask 3072
          %341 = vst.msk [vmem:[%s326] sm:$0xf] %vm340, 0.0
          %342 = vst.msk [vmem:[%s333] sm:$0xf] %vm340, -inf
        $region40: #{tpu_custom_call.1} parent=27 // pred_fallthru
          _
        %v343 = vld [vmem:[%s254] sm:$0xff]
        %v344 = vld [vmem:[%s263] sm:$0xff]
        %v345 = vld [vmem:[%s263 + $0x8] sm:$0xff]
        %v347 = vcombine.high %v343, %v343
        %349 = vmatprep.subr.mxu0 %v347
        %350 = vmatpush1.xpose.msra.mxu0 %v343
        %351 = vmatprep.subr.mxu0 0.0
        %352 = vmatpush1.xpose.msra.mxu0 0.0
        %353 = vmatprep.subr.mxu0 0.0
        %354 = vmatpush1.xpose.msra.mxu0 0.0
        %355 = vmatprep.subr.mxu0 0.0
        %356 = vmatpush1.xpose.msra.mxu0 0.0
        %357 = vmatprep.subr.mxu0 0.0
        %358 = vmatpush1.xpose.msra.mxu0 0.0
        %359 = vmatprep.subr.mxu0 0.0
        %360 = vmatpush1.xpose.msra.mxu0 0.0
        %361 = vmatprep.subr.mxu0 0.0
        %362 = vmatpush1.xpose.msra.mxu0 0.0
        %363 = vmatprep.subr.mxu0 0.0
        %364 = vmatpush1.xpose.msra.mxu0 0.0
        %365 = vmatprep.subr.mxu0 0.0
        %366 = vmatpush1.xpose.msra.mxu0 0.0
        %367 = vmatprep.subr.mxu0 0.0
        %368 = vmatpush1.xpose.msra.mxu0 0.0
        %369 = vmatprep.subr.mxu0 0.0
        %370 = vmatpush1.xpose.msra.mxu0 0.0
        %371 = vmatprep.subr.mxu0 0.0
        %372 = vmatpush1.xpose.msra.mxu0 0.0
        %373 = vmatprep.subr.mxu0 0.0
        %374 = vmatpush1.xpose.msra.mxu0 0.0
        %375 = vmatprep.subr.mxu0 0.0
        %376 = vmatpush1.xpose.msra.mxu0 0.0
        %377 = vmatprep.subr.mxu0 0.0
        %378 = vmatpush1.xpose.msra.mxu0 0.0
        %379 = vmatprep.subr.mxu0 0.0
        %380 = vmatpush1.xpose.msra.mxu0 0.0
        %381 = vmatprep.subr.mxu0 0.0
        %382 = vmatpush1.xpose.msra.mxu0 0.0
        %383 = vmatprep.subr.mxu0 0.0
        %384 = vmatpush1.xpose.msra.mxu0 0.0
        %385 = vmatprep.subr.mxu0 0.0
        %386 = vmatpush1.xpose.msra.mxu0 0.0
        %387 = vmatprep.subr.mxu0 0.0
        %388 = vmatpush1.xpose.msra.mxu0 0.0
        %389 = vmatprep.subr.mxu0 0.0
        %390 = vmatpush1.xpose.msra.mxu0 0.0
        %391 = vmatprep.subr.mxu0 0.0
        %392 = vmatpush1.xpose.msra.mxu0 0.0
        %393 = vmatprep.subr.mxu0 0.0
        %394 = vmatpush1.xpose.msra.mxu0 0.0
        %395 = vmatprep.subr.mxu0 0.0
        %396 = vmatpush1.xpose.msra.mxu0 0.0
        %397 = vmatprep.subr.mxu0 0.0
        %398 = vmatpush1.xpose.msra.mxu0 0.0
        %399 = vmatprep.subr.mxu0 0.0
        %400 = vmatpush1.xpose.msra.mxu0 0.0
        %401 = vmatprep.subr.mxu0 0.0
        %402 = vmatpush1.xpose.msra.mxu0 0.0
        %403 = vmatprep.subr.mxu0 0.0
        %404 = vmatpush1.xpose.msra.mxu0 0.0
        %405 = vmatprep.subr.mxu0 0.0
        %406 = vmatpush1.xpose.msra.mxu0 0.0
        %407 = vmatprep.subr.mxu0 0.0
        %408 = vmatpush1.xpose.msra.mxu0 0.0
        %409 = vmatprep.subr.mxu0 0.0
        %410 = vmatpush1.xpose.msra.mxu0 0.0
        %411 = vmatprep.subr.mxu0 0.0
        %412 = vmatpush1.xpose.msra.mxu0 0.0
        %413 = vmatprep.mubr.f32.mxu0 %v345
        %414 = vmatmul.mubr.f32.gmra.mrb[0].mxu0 %v344
        %v415 = vpop.f32.mrb[0].mxu0
        %v416 = vadd.f32 0.0, %v415
        %v417 = vpop.f32.mrb[0].mxu0
        %418 = vdwg.mxu0
        %vm419 = vcmask 1043456
        %v420 = vsel %vm419, %v343, 0.0
        %v421 = vsel %vm419, %v347, 0.0
        %v422 = vadd.f32 %v420, %v421
        %423 = vadd.xlane.f32.xlu0 %v422
        %v424 = vpop.xlane.xlu0 %423
        %v425 = vsel %vm419, %v343, -inf
        %v426 = vsel %vm419, %v347, -inf
        %v427 = vmax.f32 %v425, %v426
        %428 = vmax.xlane.f32.xlu0 %v427
        %v429 = vpop.xlane.xlu0 %428
        %v430 = vld [vmem:[%s319] sm:$0xff]
        %v431 = vadd.f32 %v430, %v416
        %vm432 = vcmask 31744
        %433 = vst.msk [vmem:[%s319] sm:$0xff] %vm432, %v431
        %v434 = vld [vmem:[%s326] sm:$0xf]
        %v435 = vadd.f32 %v434, %v424
        %vm436 = vcmask 3072
        %437 = vst.msk [vmem:[%s326] sm:$0xf] %vm436, %v435
        %v438 = vld [vmem:[%s333] sm:$0xf]
        %v439 = vmax.f32 %v438, %v429
        %440 = vst.msk [vmem:[%s333] sm:$0xf] %vm436, %v439
        %p441 = scmp.lt.s32.totalorder %s28, 1
        %s442 = scalar_select %p441, %s28, 1
        %p443 = scmp.lt.s32.totalorder %s27, 0
        %s444 = scalar_select %p443, %s27, 0
        %s445 = sadd.s32 %s444, %s442
        %s446 = smul.addr %s445, 8
        %s447 = scalar_lea.vmem %s2, %s446
        %p448 = scmp.lt.s32.totalorder %s28, 1
        %s449 = scalar_select %p448, %s28, 1
        %p450 = scmp.lt.s32.totalorder %s27, 0
        %s451 = scalar_select %p450, %s27, 0
        %s452 = sadd.s32 %s451, %s449
        %s453 = smul.addr %s452, 4
        %s454 = scalar_lea.vmem %s3, %s453
        %p455 = scmp.lt.s32.totalorder %s28, 1
        %s456 = scalar_select %p455, %s28, 1
        %p457 = scmp.lt.s32.totalorder %s27, 0
        %s458 = scalar_select %p457, %s27, 0
        %s459 = sadd.s32 %s458, %s456
        %s460 = smul.addr %s459, 4
        %s461 = scalar_lea.vmem %s4, %s460
        // Predicated region
        $region41: #{tpu_custom_call.1} parent=27 // pred_check
          %p462 = pneg %p121
        $region42: #{tpu_custom_call.1} parent=27 // pred_check_branch
          %464 = sbr.rel (%p462) target = $region44
        $region43: #{tpu_custom_call.1} parent=27 // pred_region
          _
        $region44: #{tpu_custom_call.1} parent=27 // pred_fallthru
          _
        // Predicated region
        $region45: #{tpu_custom_call.1} parent=27 // pred_check
          %p465 = pneg %p149
        $region46: #{tpu_custom_call.1} parent=27 // pred_check_branch
          %467 = sbr.rel (%p465) target = $region48
        $region47: #{tpu_custom_call.1} parent=27 // pred_region
          _
        $region48: #{tpu_custom_call.1} parent=27 // pred_fallthru
          _
        // Predicated region
        $region49: #{tpu_custom_call.1} parent=27 // pred_check
          %p468 = pneg %p177
        $region50: #{tpu_custom_call.1} parent=27 // pred_check_branch
          %470 = sbr.rel (%p468) target = $region52
        $region51: #{tpu_custom_call.1} parent=27 // pred_region
          _
        $region52: #{tpu_custom_call.1} parent=27 // pred_fallthru
          _
      $region28: #{tpu_custom_call.1} parent=5 // pred_fallthru
        _
      %p471 = scmp.le.s32.totalorder 2, %s17
      // Predicated region
      $region53: #{tpu_custom_call.1} parent=5 // pred_check
        %p472 = pneg %p471
      $region54: #{tpu_custom_call.1} parent=5 // pred_check_branch
        %474 = sbr.rel (%p472) target = $region56
      $region55: #{tpu_custom_call.1} parent=5 // pred_region
        %s475 = ssub.s32 %s17, 2
        // Predicated region
        $region57: #{tpu_custom_call.1} parent=55 // pred_check
          %p476 = pneg %p127
        $region58: #{tpu_custom_call.1} parent=55 // pred_check_branch
          %478 = sbr.rel (%p476) target = $region60
        $region59: #{tpu_custom_call.1} parent=55 // pred_region
          %p479 = scmp.lt.s32.totalorder %s31, 1
          %s480 = scalar_select %p479, %s31, 1
          %p481 = scmp.lt.s32.totalorder %s30, 0
          %s482 = scalar_select %p481, %s30, 0
          %s483 = sadd.s32 %s482, %s480
          %s484 = smul.addr %s483, 8
          %s485 = scalar_lea.vmem %s2, %s484
        $region60: #{tpu_custom_call.1} parent=55 // pred_fallthru
          _
        // Predicated region
        $region61: #{tpu_custom_call.1} parent=55 // pred_check
          %p486 = pneg %p155
        $region62: #{tpu_custom_call.1} parent=55 // pred_check_branch
          %488 = sbr.rel (%p486) target = $region64
        $region63: #{tpu_custom_call.1} parent=55 // pred_region
          %p489 = scmp.lt.s32.totalorder %s31, 1
          %s490 = scalar_select %p489, %s31, 1
          %p491 = scmp.lt.s32.totalorder %s30, 0
          %s492 = scalar_select %p491, %s30, 0
          %s493 = sadd.s32 %s492, %s490
          %s494 = smul.addr %s493, 4
          %s495 = scalar_lea.vmem %s3, %s494
        $region64: #{tpu_custom_call.1} parent=55 // pred_fallthru
          _
        // Predicated region
        $region65: #{tpu_custom_call.1} parent=55 // pred_check
          %p496 = pneg %p183
        $region66: #{tpu_custom_call.1} parent=55 // pred_check_branch
          %498 = sbr.rel (%p496) target = $region68
        $region67: #{tpu_custom_call.1} parent=55 // pred_region
          %p499 = scmp.lt.s32.totalorder %s31, 1
          %s500 = scalar_select %p499, %s31, 1
          %p501 = scmp.lt.s32.totalorder %s30, 0
          %s502 = scalar_select %p501, %s30, 0
          %s503 = sadd.s32 %s502, %s500
          %s504 = smul.addr %s503, 4
          %s505 = scalar_lea.vmem %s4, %s504
        $region68: #{tpu_custom_call.1} parent=55 // pred_fallthru
          _
      $region56: #{tpu_custom_call.1} parent=5 // pred_fallthru
        _
    $region6: #{tpu_custom_call.1} parent=1 // loop_footer
      %s21 = sadd.s32 1, %s17
    $region7: #{tpu_custom_call.1} parent=1 // loop_footer_branch
      %16 = sbr.rel target = $region3
    $region8: #{tpu_custom_call.1} parent=1 // loop_exit
      _
    %506 = vsyncpa [#allocation3], 1
    %s507 = scalar_lea.sflag [#allocation3], 1
    %508 = vsyncpa %s507, 1
    %509 = vsyncpa [#allocation5], 1
    %s510 = scalar_lea.sflag [#allocation5], 1
    %511 = vsyncpa %s510, 1

</llo_original>
